<compile_context>
chip_gen: v5e
topology: v5e:2x2
jax: 0.10.0
libtpu: 0.0.40
codegen_flags: <defaults>
</compile_context>

<pallas_src>
import jax
import jax.numpy as jnp
from jax.experimental import pallas as pl
from jax.experimental.pallas import tpu as pltpu


# ----------------------------------------------------------------------------------
# Helpers
# ----------------------------------------------------------------------------------
def _round_up(x, m):
    return ((x + m - 1) // m) * m


def _vmem_capacity_bytes():
    try:
        return int(pltpu.get_tpu_info().vmem_capacity_bytes)
    except Exception:
        return 64 << 20   # conservative: v7x per-TensorCore VMEM


def _pick_block_batch(B, S_pad, H, nf_pad, in_itemsize, vmem_budget_bytes):
    # Per-example VMEM: double-buffered input block + f32 conv acc / roll temp /
    # masked copy.  (Weights are budgeted separately by the caller.)
    per_ex = 2 * S_pad * H * in_itemsize + 3 * S_pad * nf_pad * 4
    bt = max(int(vmem_budget_bytes // max(per_ex, 1)), 1)
    if B >= 16:
        # Keep >= 2 grid blocks: shards across v7x's two TensorCores and keeps the
        # input DMA overlapped with compute.
        bt = min(bt, _round_up((B + 1) // 2, 8))
    if bt < B:
        bt = max(8, (bt // 8) * 8)   # sublane-aligned output blocks
    return min(bt, B)


# ----------------------------------------------------------------------------------
# Kernel
# ----------------------------------------------------------------------------------
def _make_kernel(Bt, S_pad, H, fs_max, nf_pad):
    N = Bt * S_pad

    def kernel(x_ref, wconv_ref, bconv_ref, mask_ref, wf_ref, bf_ref, out_ref):
        x = x_ref[...]                                          # [N, H] (bf16/f32)

        # acc[r] = sum_j x[r+j] @ W_j, computed Horner-style:
        #   acc <- (x @ W_j) + roll_left_1(acc)   for j = fs_max-1 .. 0
        # Every matmul uses the same aligned x; only the f32 [N, nf_pad] accumulator
        # is rolled (XLU sublane rotate).  Wrapped / cross-example rows land only in
        # positions the mask zeroes.
        acc = jnp.dot(x, wconv_ref[(fs_max - 1) * H:fs_max * H, :],
                      preferred_element_type=jnp.float32)
        for j in range(fs_max - 2, -1, -1):
            acc = (jnp.dot(x, wconv_ref[j * H:(j + 1) * H, :],
                           preferred_element_type=jnp.float32)
                   + pltpu.roll(acc, shift=N - 1, axis=0))      # roll left by 1

        c = jnp.maximum(acc + bconv_ref[...], 0.0)              # ReLU, [N, nf_pad]
        # Per-example max over time; invalid window positions zeroed after ReLU
        # (all valid values are >= 0, so the max is unchanged).
        c = c.reshape(Bt, S_pad, nf_pad) * mask_ref[...]        # [Bt, S_pad, nf_pad]
        pooled = jnp.max(c, axis=1)                             # [Bt, nf_pad]

        # Fused (fc @ op) linear + softmax.  Padded class lanes carry bias -1e30 so
        # exp() underflows to exactly 0 there.
        logits = jnp.dot(pooled, wf_ref[...],
                         preferred_element_type=jnp.float32) + bf_ref[...]
        m = jnp.max(logits, axis=-1, keepdims=True)
        e = jnp.exp(logits - m)
        inv = pl.reciprocal(jnp.sum(e, axis=-1, keepdims=True), approx=True)
        out_ref[...] = (e * inv).astype(out_ref.dtype)

    return kernel


# ----------------------------------------------------------------------------------
# Offline weight packing / mask construction (plain JAX, outside the kernel)
# ----------------------------------------------------------------------------------
def _pack_params(params, *, filter_sizes, hidden, n_filters, n_class, nf_pad, nc_pad):
    fs_max = max(filter_sizes)
    n_fs = len(filter_sizes)
    wconv = jnp.zeros((fs_max * hidden, nf_pad), jnp.float32)
    bconv = jnp.zeros((1, nf_pad), jnp.float32)
    for i, fs in enumerate(filter_sizes):
        c0 = i * n_filters
        wconv = wconv.at[: fs * hidden, c0:c0 + n_filters].set(params[f"conv_w{i}"])
        bconv = bconv.at[:, c0:c0 + n_filters].set(params[f"conv_b{i}"])
    # fc -> op with no activation in between (dropout = identity at inference).
    hi = jax.lax.Precision.HIGHEST
    wf = jnp.dot(params["fc_w"], params["op_w"], precision=hi)                   # [n_fs*nf, n_class]
    bf = jnp.dot(params["fc_b"], params["op_w"], precision=hi) + params["op_b"]  # [1, n_class]
    wfused = jnp.zeros((nf_pad, nc_pad), jnp.float32)
    wfused = wfused.at[: n_fs * n_filters, :n_class].set(wf)
    bfused = jnp.full((1, nc_pad), -1e30, jnp.float32)
    bfused = bfused.at[:, :n_class].set(bf)
    return wconv, bconv, wfused, bfused


def _window_mask(S, S_pad, filter_sizes, n_filters, nf_pad):
    mask = jnp.zeros((S_pad, nf_pad), jnp.float32)
    for i, fs in enumerate(filter_sizes):
        n_valid = max(S - fs + 1, 0)
        mask = mask.at[:n_valid, i * n_filters:(i + 1) * n_filters].set(1.0)
    return mask


# ----------------------------------------------------------------------------------
# Wrapper
# ----------------------------------------------------------------------------------
def cnn_model_forward(last_hidden, params, *, filter_sizes, n_class, n_filters,
                      block_batch=None, input_dtype=jnp.bfloat16):
    """last_hidden: [B, S, H].  Returns class probabilities [B, n_class] (float32)."""
    B, S, H = last_hidden.shape
    fs_max = max(filter_sizes)
    n_fs = len(filter_sizes)
    nf_pad = _round_up(max(n_fs * n_filters, 1), 128)
    nc_pad = _round_up(max(n_class, 1), 128)
    S_pad = _round_up(S, 8)
    in_itemsize = jnp.dtype(input_dtype).itemsize

    wconv, bconv, wfused, bfused = _pack_params(
        params, filter_sizes=filter_sizes, hidden=H, n_filters=n_filters,
        n_class=n_class, nf_pad=nf_pad, nc_pad=nc_pad)
    wconv = wconv.astype(input_dtype)
    mask = _window_mask(S, S_pad, filter_sizes, n_filters, nf_pad)

    # VMEM-budgeted batch tile, per generation (v5e/v6e: 128 MiB, v7x: 64 MiB).
    vmem_cap = _vmem_capacity_bytes()
    const_bytes = int(wconv.size) * in_itemsize + int(
        bconv.size + mask.size + wfused.size + bfused.size) * 4
    vmem_limit = int(min(int(vmem_cap * 0.85), 112 << 20))
    budget = max(vmem_cap // 2 - 2 * const_bytes, 4 << 20)

    if block_batch is None:
        Bt = _pick_block_batch(B, S_pad, H, nf_pad, in_itemsize, budget)
    else:
        Bt = max(1, min(block_batch, B))
        if Bt < B:
            Bt = max(8, (Bt // 8) * 8)
    n_blocks = pl.cdiv(B, Bt)
    B_pad = n_blocks * Bt

    xh = last_hidden.astype(input_dtype)
    if S_pad != S:
        xh = jnp.pad(xh, ((0, 0), (0, S_pad - S), (0, 0)))
    if B_pad != B:
        xh = jnp.pad(xh, ((0, B_pad - B), (0, 0), (0, 0)))
    x2d = xh.reshape(B_pad * S_pad, H)

    kernel = _make_kernel(Bt, S_pad, H, fs_max, nf_pad)

    cost = pl.CostEstimate(
        flops=int(2 * B_pad * S_pad * H * nf_pad * fs_max
                  + 2 * B_pad * nf_pad * nc_pad),
        transcendentals=int(B_pad * nc_pad + B_pad),
        bytes_accessed=int(B_pad * S_pad * H * in_itemsize + const_bytes
                           + B_pad * nc_pad * 4),
    )

    def _call(single_buffer_consts):
        def _const_spec(a):
            nd = a.ndim
            idx = lambda b, _nd=nd: (0,) * _nd
            if single_buffer_consts:
                return pl.BlockSpec(a.shape, idx, pipeline_mode=pl.Buffered(1))
            return pl.BlockSpec(a.shape, idx)

        out = pl.pallas_call(
            kernel,
            out_shape=jax.ShapeDtypeStruct((B_pad, nc_pad), jnp.float32),
            grid=(n_blocks,),
            in_specs=[pl.BlockSpec((Bt * S_pad, H), lambda b: (b, 0)),
                      _const_spec(wconv), _const_spec(bconv), _const_spec(mask),
                      _const_spec(wfused), _const_spec(bfused)],
            out_specs=pl.BlockSpec((Bt, nc_pad), lambda b: (b, 0)),
            compiler_params=pltpu.CompilerParams(
                dimension_semantics=("parallel",),
                vmem_limit_bytes=vmem_limit),
            cost_estimate=cost,
        )(x2d, wconv, bconv, mask, wfused, bfused)
        return jax.block_until_ready(out)

    try:
        out = _call(True)
    except Exception:
        # TODO(synk): pl.Buffered(1) single-buffered constants unsupported on this
        # jax/Mosaic version; fall back to default (double-buffered) constant blocks.
        out = _call(False)

    return out[:B, :n_class]


# ----------------------------------------------------------------------------------
# Parameter init (matches the PyTorch module shapes) and pure-JAX reference
# ----------------------------------------------------------------------------------
def init_params(key, *, hidden, n_filters, filter_sizes, hid_dim, n_class):
    params = {}
    keys = jax.random.split(key, 2 * len(filter_sizes) + 4)
    k = 0
    for i, fs in enumerate(filter_sizes):
        params[f"conv_w{i}"] = (
            jax.random.normal(keys[k], (fs * hidden, n_filters), jnp.float32) * 0.05)
        k += 1
        params[f"conv_b{i}"] = (
            jax.random.normal(keys[k], (1, n_filters), jnp.float32) * 0.01)
        k += 1
    cat_dim = len(filter_sizes) * n_filters
    params["fc_w"] = jax.random.normal(keys[k], (cat_dim, hid_dim), jnp.float32) * 0.05
    k += 1
    params["fc_b"] = jax.random.normal(keys[k], (1, hid_dim), jnp.float32) * 0.01
    k += 1
    params["op_w"] = jax.random.normal(keys[k], (hid_dim, n_class), jnp.float32) * 0.05
    k += 1
    params["op_b"] = jax.random.normal(keys[k], (1, n_class), jnp.float32) * 0.01
    return params


def reference_forward(last_hidden, params, *, filter_sizes):
    """Pure-JAX reference of the same math (for verification)."""
    B, S, H = last_hidden.shape
    pooled = []
    for i, fs in enumerate(filter_sizes):
        L = S - fs + 1
        win = jnp.concatenate(
            [last_hidden[:, j: j + L, :] for j in range(fs)], axis=-1)  # [B, L, fs*H]
        c = jnp.einsum("blk,kf->blf", win, params[f"conv_w{i}"]) + params[f"conv_b{i}"]
        c = jnp.maximum(c, 0.0)
        pooled.append(jnp.max(c, axis=1))
    cat = jnp.concatenate(pooled, axis=-1)
    u = cat @ params["fc_w"] + params["fc_b"]
    logits = u @ params["op_w"] + params["op_b"]
    return jax.nn.softmax(logits, axis=1)


if __name__ == "__main__":
    # Small shapes consistent with the module structure:
    #   hidden H=32 -> hid_dim = H // 8 = 4, n_filters=10, filter_sizes=(2,3,4), n_class=3
    B, S, H = 2, 8, 32
    n_filters, n_class = 10, 3
    filter_sizes = (2, 3, 4)
    hid_dim = H // 8
    vocab = 50

    key = jax.random.PRNGKey(0)
    k_emb, k_ids, k_params = jax.random.split(key, 3)

    # ---- BERT stand-in (plain JAX glue): embedding lookup masked by attention mask ----
    emb_table = jax.random.normal(k_emb, (vocab, H), jnp.float32)
    in_ids = jax.random.randint(k_ids, (B, S), 0, vocab)
    att_masks = jnp.ones((B, S), jnp.float32).at[1, -2:].set(0.0)
    last_hidden_state = emb_table[in_ids] * att_masks[..., None]   # [B, S, H]

    params = init_params(
        k_params, hidden=H, n_filters=n_filters, filter_sizes=filter_sizes,
        hid_dim=hid_dim, n_class=n_class)

    ref = reference_forward(last_hidden_state, params, filter_sizes=filter_sizes)

    # f32 path: tight check of the kernel math (incl. the roll-based conv).
    probs_f32 = cnn_model_forward(
        last_hidden_state, params, filter_sizes=filter_sizes, n_class=n_class,
        n_filters=n_filters, input_dtype=jnp.float32)
    probs_f32 = jax.block_until_ready(probs_f32)
    assert probs_f32.shape == (B, n_class)
    assert jnp.allclose(probs_f32, ref, atol=2e-3, rtol=0), float(
        jnp.max(jnp.abs(probs_f32 - ref)))

    # Default bf16 path (production config, HBM-bound read halved).
    probs = cnn_model_forward(
        last_hidden_state, params, filter_sizes=filter_sizes, n_class=n_class,
        n_filters=n_filters)
    probs = jax.block_until_ready(probs)
    assert probs.shape == (B, n_class)
    assert jnp.allclose(probs, ref, atol=3e-2, rtol=0), float(
        jnp.max(jnp.abs(probs - ref)))
    assert jnp.allclose(jnp.sum(probs, axis=1), 1.0, atol=5e-3)

    print("KERNEL_OK")
</pallas_src>

<mosaic_0001>
module attributes {stable_mosaic.version = 11 : i64} {
  func.func @kernel(%arg0: i32, %arg1: memref<16x32xf32, #tpu.memory_space<vmem>>, %arg2: memref<128x128xf32, #tpu.memory_space<vmem>>, %arg3: memref<1x128xf32, #tpu.memory_space<vmem>>, %arg4: memref<8x128xf32, #tpu.memory_space<vmem>>, %arg5: memref<128x128xf32, #tpu.memory_space<vmem>>, %arg6: memref<1x128xf32, #tpu.memory_space<vmem>>, %arg7: memref<2x128xf32, #tpu.memory_space<vmem>>) attributes {dimension_semantics = [#tpu.dimension_semantics<parallel>], iteration_bounds = array<i64: 1>, scalar_prefetch = 0 : i64, scratch_operands = 0 : i64, tpu.core_type = #tpu.core_type<tc>, window_params = [{transform_indices = @transform_0, window_bounds = array<i64: 16, 32>}, {pipeline_mode = #tpu.pipeline_mode<synchronous>, transform_indices = @transform_1, window_bounds = array<i64: 128, 128>}, {pipeline_mode = #tpu.pipeline_mode<synchronous>, transform_indices = @transform_2, window_bounds = array<i64: 1, 128>}, {pipeline_mode = #tpu.pipeline_mode<synchronous>, transform_indices = @transform_3, window_bounds = array<i64: 8, 128>}, {pipeline_mode = #tpu.pipeline_mode<synchronous>, transform_indices = @transform_4, window_bounds = array<i64: 128, 128>}, {pipeline_mode = #tpu.pipeline_mode<synchronous>, transform_indices = @transform_5, window_bounds = array<i64: 1, 128>}, {transform_indices = @transform_6, window_bounds = array<i64: 2, 128>}]} {
    %c0 = arith.constant 0 : index
    %c0_0 = arith.constant 0 : index
    %0 = vector.load %arg1[%c0, %c0_0] : memref<16x32xf32, #tpu.memory_space<vmem>>, vector<16x32xf32>
    %c96 = arith.constant 96 : index
    %c0_1 = arith.constant 0 : index
    %1 = vector.load %arg2[%c96, %c0_1] : memref<128x128xf32, #tpu.memory_space<vmem>>, vector<32x128xf32>
    %cst = arith.constant dense<0.000000e+00> : vector<16x128xf32>
    %2 = tpu.matmul %0, %1, %cst {dimension_numbers = #tpu.dot_dimension_numbers<[1], [0], [0], [1], [0, 0, 1, 1], [], []>} : vector<16x32xf32>, vector<32x128xf32>, vector<16x128xf32> -> vector<16x128xf32>
    %c64 = arith.constant 64 : index
    %c0_2 = arith.constant 0 : index
    %3 = vector.load %arg2[%c64, %c0_2] : memref<128x128xf32, #tpu.memory_space<vmem>>, vector<32x128xf32>
    %cst_3 = arith.constant dense<0.000000e+00> : vector<16x128xf32>
    %4 = tpu.matmul %0, %3, %cst_3 {dimension_numbers = #tpu.dot_dimension_numbers<[1], [0], [0], [1], [0, 0, 1, 1], [], []>} : vector<16x32xf32>, vector<32x128xf32>, vector<16x128xf32> -> vector<16x128xf32>
    %c15_i32 = arith.constant 15 : i32
    %5 = tpu.dynamic_rotate %2 by %c15_i32 dim 0 : vector<16x128xf32>, i32 -> vector<16x128xf32>
    %6 = arith.addf %4, %5 : vector<16x128xf32>
    %c32 = arith.constant 32 : index
    %c0_4 = arith.constant 0 : index
    %7 = vector.load %arg2[%c32, %c0_4] : memref<128x128xf32, #tpu.memory_space<vmem>>, vector<32x128xf32>
    %cst_5 = arith.constant dense<0.000000e+00> : vector<16x128xf32>
    %8 = tpu.matmul %0, %7, %cst_5 {dimension_numbers = #tpu.dot_dimension_numbers<[1], [0], [0], [1], [0, 0, 1, 1], [], []>} : vector<16x32xf32>, vector<32x128xf32>, vector<16x128xf32> -> vector<16x128xf32>
    %c15_i32_6 = arith.constant 15 : i32
    %9 = tpu.dynamic_rotate %6 by %c15_i32_6 dim 0 : vector<16x128xf32>, i32 -> vector<16x128xf32>
    %10 = arith.addf %8, %9 : vector<16x128xf32>
    %c0_7 = arith.constant 0 : index
    %c0_8 = arith.constant 0 : index
    %11 = vector.load %arg2[%c0_7, %c0_8] : memref<128x128xf32, #tpu.memory_space<vmem>>, vector<32x128xf32>
    %cst_9 = arith.constant dense<0.000000e+00> : vector<16x128xf32>
    %12 = tpu.matmul %0, %11, %cst_9 {dimension_numbers = #tpu.dot_dimension_numbers<[1], [0], [0], [1], [0, 0, 1, 1], [], []>} : vector<16x32xf32>, vector<32x128xf32>, vector<16x128xf32> -> vector<16x128xf32>
    %c15_i32_10 = arith.constant 15 : i32
    %13 = tpu.dynamic_rotate %10 by %c15_i32_10 dim 0 : vector<16x128xf32>, i32 -> vector<16x128xf32>
    %14 = arith.addf %12, %13 : vector<16x128xf32>
    %c0_11 = arith.constant 0 : index
    %c0_12 = arith.constant 0 : index
    %15 = vector.load %arg3[%c0_11, %c0_12] : memref<1x128xf32, #tpu.memory_space<vmem>>, vector<1x128xf32>
    %16 = vector.broadcast %15 : vector<1x128xf32> to vector<16x128xf32>
    %17 = arith.addf %14, %16 : vector<16x128xf32>
    %cst_13 = arith.constant 0.000000e+00 : f32
    %18 = vector.broadcast %cst_13 : f32 to vector<16x128xf32>
    %19 = arith.maximumf %17, %18 : vector<16x128xf32>
    %20 = vector.shape_cast %19 : vector<16x128xf32> to vector<2x8x128xf32>
    %c0_14 = arith.constant 0 : index
    %c0_15 = arith.constant 0 : index
    %21 = vector.load %arg4[%c0_14, %c0_15] : memref<8x128xf32, #tpu.memory_space<vmem>>, vector<8x128xf32>
    %22 = vector.shape_cast %21 : vector<8x128xf32> to vector<1x8x128xf32>
    %23 = vector.broadcast %22 : vector<1x8x128xf32> to vector<2x8x128xf32>
    %24 = arith.mulf %20, %23 : vector<2x8x128xf32>
    %cst_16 = arith.constant dense<0xFF800000> : vector<2x128xf32>
    %25 = vector.multi_reduction <maximumf>, %24, %cst_16 [1] : vector<2x8x128xf32> to vector<2x128xf32>
    %c0_17 = arith.constant 0 : index
    %c0_18 = arith.constant 0 : index
    %26 = vector.load %arg5[%c0_17, %c0_18] : memref<128x128xf32, #tpu.memory_space<vmem>>, vector<128x128xf32>
    %cst_19 = arith.constant dense<0.000000e+00> : vector<2x128xf32>
    %27 = tpu.matmul %25, %26, %cst_19 {dimension_numbers = #tpu.dot_dimension_numbers<[1], [0], [0], [1], [0, 0, 1, 1], [], []>} : vector<2x128xf32>, vector<128x128xf32>, vector<2x128xf32> -> vector<2x128xf32>
    %c0_20 = arith.constant 0 : index
    %c0_21 = arith.constant 0 : index
    %28 = vector.load %arg6[%c0_20, %c0_21] : memref<1x128xf32, #tpu.memory_space<vmem>>, vector<1x128xf32>
    %29 = vector.broadcast %28 : vector<1x128xf32> to vector<2x128xf32>
    %30 = arith.addf %27, %29 : vector<2x128xf32>
    %cst_22 = arith.constant dense<0xFF800000> : vector<2xf32>
    %31 = vector.multi_reduction <maximumf>, %30, %cst_22 [1] : vector<2x128xf32> to vector<2xf32>
    %32 = vector.shape_cast %31 : vector<2xf32> to vector<2x1xf32>
    %33 = vector.broadcast %32 : vector<2x1xf32> to vector<2x128xf32>
    %34 = arith.subf %30, %33 : vector<2x128xf32>
    %35 = math.exp %34 : vector<2x128xf32>
    %cst_23 = arith.constant dense<0.000000e+00> : vector<2xf32>
    %36 = vector.multi_reduction <add>, %35, %cst_23 [1] : vector<2x128xf32> to vector<2xf32>
    %37 = vector.shape_cast %36 : vector<2xf32> to vector<2x1xf32>
    %38 = tpu.reciprocal %37 {approx = true} : vector<2x1xf32> -> vector<2x1xf32>
    %39 = vector.broadcast %38 : vector<2x1xf32> to vector<2x128xf32>
    %40 = arith.mulf %35, %39 : vector<2x128xf32>
    %c0_24 = arith.constant 0 : index
    %c0_25 = arith.constant 0 : index
    %41 = vector.load %arg7[%c0_24, %c0_25] : memref<2x128xf32, #tpu.memory_space<vmem>>, vector<2x128xf32>
    tpu.vector_store %arg7[%c0_24, %c0_25], %40 {strides = array<i32>} : memref<2x128xf32, #tpu.memory_space<vmem>>, vector<2x128xf32>,
    return
  }
  func.func @transform_0(%arg0: i32) -> (i32, i32) {
    %c0_i32 = arith.constant 0 : i32
    %c0_i32_0 = arith.constant 0 : i32
    return %arg0, %c0_i32 : i32, i32
  }
  func.func @transform_1(%arg0: i32) -> (i32, i32) {
    %c0_i32 = arith.constant 0 : i32
    %c0_i32_0 = arith.constant 0 : i32
    %c0_i32_1 = arith.constant 0 : i32
    return %c0_i32, %c0_i32_0 : i32, i32
  }
  func.func @transform_2(%arg0: i32) -> (i32, i32) {
    %c0_i32 = arith.constant 0 : i32
    %c0_i32_0 = arith.constant 0 : i32
    %c0_i32_1 = arith.constant 0 : i32
    return %c0_i32, %c0_i32_0 : i32, i32
  }
  func.func @transform_3(%arg0: i32) -> (i32, i32) {
    %c0_i32 = arith.constant 0 : i32
    %c0_i32_0 = arith.constant 0 : i32
    %c0_i32_1 = arith.constant 0 : i32
    return %c0_i32, %c0_i32_0 : i32, i32
  }
  func.func @transform_4(%arg0: i32) -> (i32, i32) {
    %c0_i32 = arith.constant 0 : i32
    %c0_i32_0 = arith.constant 0 : i32
    %c0_i32_1 = arith.constant 0 : i32
    return %c0_i32, %c0_i32_0 : i32, i32
  }
  func.func @transform_5(%arg0: i32) -> (i32, i32) {
    %c0_i32 = arith.constant 0 : i32
    %c0_i32_0 = arith.constant 0 : i32
    %c0_i32_1 = arith.constant 0 : i32
    return %c0_i32, %c0_i32_0 : i32, i32
  }
  func.func @transform_6(%arg0: i32) -> (i32, i32) {
    %c0_i32 = arith.constant 0 : i32
    %c0_i32_0 = arith.constant 0 : i32
    return %arg0, %c0_i32 : i32, i32
  }
}

module attributes {stable_mosaic.version = 11 : i64} {
  func.func @kernel(%arg0: i32, %arg1: memref<16x32xf32, #tpu.memory_space<vmem>>, %arg2: memref<128x128xf32, #tpu.memory_space<vmem>>, %arg3: memref<1x128xf32, #tpu.memory_space<vmem>>, %arg4: memref<8x128xf32, #tpu.memory_space<vmem>>, %arg5: memref<128x128xf32, #tpu.memory_space<vmem>>, %arg6: memref<1x128xf32, #tpu.memory_space<vmem>>, %arg7: memref<2x128xf32, #tpu.memory_space<vmem>>) attributes {dimension_semantics = [#tpu.dimension_semantics<parallel>], iteration_bounds = array<i64: 1>, scalar_prefetch = 0 : i64, scratch_operands = 0 : i64, tpu.core_type = #tpu.core_type<tc>, window_params = [{transform_indices = @transform_0, window_bounds = array<i64: 16, 32>}, {pipeline_mode = #tpu.pipeline_mode<synchronous>, transform_indices = @transform_1, window_bounds = array<i64: 128, 128>}, {pipeline_mode = #tpu.pipeline_mode<synchronous>, transform_indices = @transform_2, window_bounds = array<i64: 1, 128>}, {pipeline_mode = #tpu.pipeline_mode<synchronous>, transform_indices = @transform_3, window_bounds = array<i64: 8, 128>}, {pipeline_mode = #tpu.pipeline_mode<synchronous>, transform_indices = @transform_4, window_bounds = array<i64: 128, 128>}, {pipeline_mode = #tpu.pipeline_mode<synchronous>, transform_indices = @transform_5, window_bounds = array<i64: 1, 128>}, {transform_indices = @transform_6, window_bounds = array<i64: 2, 128>}]} {
    %c0 = arith.constant 0 : index
    %c0_0 = arith.constant 0 : index
    %0 = vector.load %arg1[%c0, %c0_0] : memref<16x32xf32, #tpu.memory_space<vmem>>, vector<16x32xf32>
    %c96 = arith.constant 96 : index
    %c0_1 = arith.constant 0 : index
    %1 = vector.load %arg2[%c96, %c0_1] : memref<128x128xf32, #tpu.memory_space<vmem>>, vector<32x128xf32>
    %cst = arith.constant dense<0.000000e+00> : vector<16x128xf32>
    %2 = tpu.matmul %0, %1, %cst {dimension_numbers = #tpu.dot_dimension_numbers<[1], [0], [0], [1], [0, 0, 1, 1], [], []>} : vector<16x32xf32>, vector<32x128xf32>, vector<16x128xf32> -> vector<16x128xf32>
    %c64 = arith.constant 64 : index
    %c0_2 = arith.constant 0 : index
    %3 = vector.load %arg2[%c64, %c0_2] : memref<128x128xf32, #tpu.memory_space<vmem>>, vector<32x128xf32>
    %cst_3 = arith.constant dense<0.000000e+00> : vector<16x128xf32>
    %4 = tpu.matmul %0, %3, %cst_3 {dimension_numbers = #tpu.dot_dimension_numbers<[1], [0], [0], [1], [0, 0, 1, 1], [], []>} : vector<16x32xf32>, vector<32x128xf32>, vector<16x128xf32> -> vector<16x128xf32>
    %c15_i32 = arith.constant 15 : i32
    %5 = tpu.dynamic_rotate %2 by %c15_i32 dim 0 : vector<16x128xf32>, i32 -> vector<16x128xf32>
    %6 = arith.addf %4, %5 : vector<16x128xf32>
    %c32 = arith.constant 32 : index
    %c0_4 = arith.constant 0 : index
    %7 = vector.load %arg2[%c32, %c0_4] : memref<128x128xf32, #tpu.memory_space<vmem>>, vector<32x128xf32>
    %cst_5 = arith.constant dense<0.000000e+00> : vector<16x128xf32>
    %8 = tpu.matmul %0, %7, %cst_5 {dimension_numbers = #tpu.dot_dimension_numbers<[1], [0], [0], [1], [0, 0, 1, 1], [], []>} : vector<16x32xf32>, vector<32x128xf32>, vector<16x128xf32> -> vector<16x128xf32>
    %c15_i32_6 = arith.constant 15 : i32
    %9 = tpu.dynamic_rotate %6 by %c15_i32_6 dim 0 : vector<16x128xf32>, i32 -> vector<16x128xf32>
    %10 = arith.addf %8, %9 : vector<16x128xf32>
    %c0_7 = arith.constant 0 : index
    %c0_8 = arith.constant 0 : index
    %11 = vector.load %arg2[%c0_7, %c0_8] : memref<128x128xf32, #tpu.memory_space<vmem>>, vector<32x128xf32>
    %cst_9 = arith.constant dense<0.000000e+00> : vector<16x128xf32>
    %12 = tpu.matmul %0, %11, %cst_9 {dimension_numbers = #tpu.dot_dimension_numbers<[1], [0], [0], [1], [0, 0, 1, 1], [], []>} : vector<16x32xf32>, vector<32x128xf32>, vector<16x128xf32> -> vector<16x128xf32>
    %c15_i32_10 = arith.constant 15 : i32
    %13 = tpu.dynamic_rotate %10 by %c15_i32_10 dim 0 : vector<16x128xf32>, i32 -> vector<16x128xf32>
    %14 = arith.addf %12, %13 : vector<16x128xf32>
    %c0_11 = arith.constant 0 : index
    %c0_12 = arith.constant 0 : index
    %15 = vector.load %arg3[%c0_11, %c0_12] : memref<1x128xf32, #tpu.memory_space<vmem>>, vector<1x128xf32>
    %16 = vector.broadcast %15 : vector<1x128xf32> to vector<16x128xf32>
    %17 = arith.addf %14, %16 : vector<16x128xf32>
    %cst_13 = arith.constant 0.000000e+00 : f32
    %18 = vector.broadcast %cst_13 : f32 to vector<16x128xf32>
    %19 = arith.maximumf %17, %18 : vector<16x128xf32>
    %20 = vector.shape_cast %19 : vector<16x128xf32> to vector<2x8x128xf32>
    %c0_14 = arith.constant 0 : index
    %c0_15 = arith.constant 0 : index
    %21 = vector.load %arg4[%c0_14, %c0_15] : memref<8x128xf32, #tpu.memory_space<vmem>>, vector<8x128xf32>
    %22 = vector.shape_cast %21 : vector<8x128xf32> to vector<1x8x128xf32>
    %23 = vector.broadcast %22 : vector<1x8x128xf32> to vector<2x8x128xf32>
    %24 = arith.mulf %20, %23 : vector<2x8x128xf32>
    %cst_16 = arith.constant dense<0xFF800000> : vector<2x128xf32>
    %25 = vector.multi_reduction <maximumf>, %24, %cst_16 [1] : vector<2x8x128xf32> to vector<2x128xf32>
    %c0_17 = arith.constant 0 : index
    %c0_18 = arith.constant 0 : index
    %26 = vector.load %arg5[%c0_17, %c0_18] : memref<128x128xf32, #tpu.memory_space<vmem>>, vector<128x128xf32>
    %cst_19 = arith.constant dense<0.000000e+00> : vector<2x128xf32>
    %27 = tpu.matmul %25, %26, %cst_19 {dimension_numbers = #tpu.dot_dimension_numbers<[1], [0], [0], [1], [0, 0, 1, 1], [], []>} : vector<2x128xf32>, vector<128x128xf32>, vector<2x128xf32> -> vector<2x128xf32>
    %c0_20 = arith.constant 0 : index
    %c0_21 = arith.constant 0 : index
    %28 = vector.load %arg6[%c0_20, %c0_21] : memref<1x128xf32, #tpu.memory_space<vmem>>, vector<1x128xf32>
    %29 = vector.broadcast %28 : vector<1x128xf32> to vector<2x128xf32>
    %30 = arith.addf %27, %29 : vector<2x128xf32>
    %cst_22 = arith.constant dense<0xFF800000> : vector<2xf32>
    %31 = vector.multi_reduction <maximumf>, %30, %cst_22 [1] : vector<2x128xf32> to vector<2xf32>
    %32 = vector.shape_cast %31 : vector<2xf32> to vector<2x1xf32>
    %33 = vector.broadcast %32 : vector<2x1xf32> to vector<2x128xf32>
    %34 = arith.subf %30, %33 : vector<2x128xf32>
    %35 = math.exp %34 : vector<2x128xf32>
    %cst_23 = arith.constant dense<0.000000e+00> : vector<2xf32>
    %36 = vector.multi_reduction <add>, %35, %cst_23 [1] : vector<2x128xf32> to vector<2xf32>
    %37 = vector.shape_cast %36 : vector<2xf32> to vector<2x1xf32>
    %38 = tpu.reciprocal %37 {approx = true} : vector<2x1xf32> -> vector<2x1xf32>
    %39 = vector.broadcast %38 : vector<2x1xf32> to vector<2x128xf32>
    %40 = arith.mulf %35, %39 : vector<2x128xf32>
    %c0_24 = arith.constant 0 : index
    %c0_25 = arith.constant 0 : index
    %41 = vector.load %arg7[%c0_24, %c0_25] : memref<2x128xf32, #tpu.memory_space<vmem>>, vector<2x128xf32>
    tpu.vector_store %arg7[%c0_24, %c0_25], %40 {strides = array<i32>} : memref<2x128xf32, #tpu.memory_space<vmem>>, vector<2x128xf32>,
    return
  }
  func.func @transform_0(%arg0: i32) -> (i32, i32) {
    %c0_i32 = arith.constant 0 : i32
    %c0_i32_0 = arith.constant 0 : i32
    return %arg0, %c0_i32 : i32, i32
  }
  func.func @transform_1(%arg0: i32) -> (i32, i32) {
    %c0_i32 = arith.constant 0 : i32
    %c0_i32_0 = arith.constant 0 : i32
    %c0_i32_1 = arith.constant 0 : i32
    return %c0_i32, %c0_i32_0 : i32, i32
  }
  func.func @transform_2(%arg0: i32) -> (i32, i32) {
    %c0_i32 = arith.constant 0 : i32
    %c0_i32_0 = arith.constant 0 : i32
    %c0_i32_1 = arith.constant 0 : i32
    return %c0_i32, %c0_i32_0 : i32, i32
  }
  func.func @transform_3(%arg0: i32) -> (i32, i32) {
    %c0_i32 = arith.constant 0 : i32
    %c0_i32_0 = arith.constant 0 : i32
    %c0_i32_1 = arith.constant 0 : i32
    return %c0_i32, %c0_i32_0 : i32, i32
  }
  func.func @transform_4(%arg0: i32) -> (i32, i32) {
    %c0_i32 = arith.constant 0 : i32
    %c0_i32_0 = arith.constant 0 : i32
    %c0_i32_1 = arith.constant 0 : i32
    return %c0_i32, %c0_i32_0 : i32, i32
  }
  func.func @transform_5(%arg0: i32) -> (i32, i32) {
    %c0_i32 = arith.constant 0 : i32
    %c0_i32_0 = arith.constant 0 : i32
    %c0_i32_1 = arith.constant 0 : i32
    return %c0_i32, %c0_i32_0 : i32, i32
  }
  func.func @transform_6(%arg0: i32) -> (i32, i32) {
    %c0_i32 = arith.constant 0 : i32
    %c0_i32_0 = arith.constant 0 : i32
    return %arg0, %c0_i32 : i32, i32
  }
}

</mosaic_0001>

<llo_original>
// kernel: tpu_custom_call.1
$region0: #{tpu_custom_call.1}
  #allocation0 [shape = 'u32[]', space=smem, size = 0x4, offset = 0x4, fixed_abs, tag = 'smem constant byte address 0x4 - core index']
  #allocation1 [shape = 'u32[72,128]{1,0:T(1,128)}', space=vmem, size = 0x9000, scoped, tag = 'internal scratch']
  %s0 = inlined_call_operand.hbm [shape: f32[16,32], index: 0, kind: input, shape index: {}]
  %s1 = inlined_call_operand.hbm [shape: f32[128,128], index: 1, kind: input, shape index: {}]
  %s2 = inlined_call_operand.vmem [shape: f32[1,128], index: 2, kind: input, shape index: {}]
  %s3 = inlined_call_operand.hbm [shape: f32[8,128], index: 3, kind: input, shape index: {}]
  %s4 = inlined_call_operand.hbm [shape: f32[128,128], index: 4, kind: input, shape index: {}]
  %s5 = inlined_call_operand.vmem [shape: f32[1,128], index: 5, kind: input, shape index: {}]
  %s6 = inlined_call_operand.hbm [shape: f32[2,128], index: 6, kind: output, shape index: {}]
  %s7 = sld [smem:[#allocation0]]
  $region50: #{tpu_custom_call.1} parent=0
    _
  %s9 = ssub.s32 1, %s7
  %s10 = scalar_select 0, %s9, %s7
  $region1: #{tpu_custom_call.1} parent=0
    #allocation2 [shape = 'u8[8192]{0}', space=vmem, size = 0x2000, scoped, tag = 'input window, operand 0, single buffered']
    #allocation3 [shape = 's32[1]{0}', space=sflag, size = 0x4, scoped, tag = 'scoped memory for tpu_custom_call.1']
    #allocation4 [shape = 's32[1]{0}', space=sflag, size = 0x4, scoped, tag = 'scoped memory for tpu_custom_call.1']
    #allocation5 [shape = 'u8[65536]{0}', space=vmem, size = 0x10000, scoped, tag = 'input window, operand 1, single buffered']
    #allocation6 [shape = 's32[1]{0}', space=sflag, size = 0x4, scoped, tag = 'scoped memory for tpu_custom_call.1']
    #allocation7 [shape = 'u8[4096]{0}', space=vmem, size = 0x1000, scoped, tag = 'input window, operand 3, single buffered']
    #allocation8 [shape = 'u8[65536]{0}', space=vmem, size = 0x10000, scoped, tag = 'input window, operand 4, single buffered']
    #allocation9 [shape = 's32[1]{0}', space=sflag, size = 0x4, scoped, tag = 'scoped memory for tpu_custom_call.1']
    #allocation10 [shape = 'u8[1024]{0}', space=vmem, size = 0x400, scoped, tag = 'output window, operand 0, single buffered']
    %11 = vsyncpa [#allocation3], 0
    %12 = vsyncpa [#allocation6], 0
    %13 = vsyncpa [#allocation9], 0
    %14 = vsyncpa [#allocation4], 0
    // Predicated region
    $region2: #{tpu_custom_call.1} parent=1 // pred_check
      _
    $region3: #{tpu_custom_call.1} parent=1 // pred_check_branch
      %16 = sbr.rel (0) target = $region5
    $region4: #{tpu_custom_call.1} parent=1 // pred_region
      %18 = vsyncadd [#allocation3], 0
      %s19 = sshll.u32 %s0, 4
      %s20 = int_to_ptr.hbm [resolvable:$true] %s19
      %s21 = sshll.u32 [#allocation2], 4
      %s22 = int_to_ptr.vmem [resolvable:$true] %s21
      %27 = dma.hbm_to_vmem [thread:$0]  %s20, 256, %s22, [#allocation3], 128, 128, 8
    $region5: #{tpu_custom_call.1} parent=1 // pred_fallthru
      _
    // Predicated region
    $region6: #{tpu_custom_call.1} parent=1 // pred_check
      _
    $region7: #{tpu_custom_call.1} parent=1 // pred_check_branch
      %29 = sbr.rel (0) target = $region9
    $region8: #{tpu_custom_call.1} parent=1 // pred_region
      %31 = vsyncadd [#allocation6], 0
      %s32 = sshll.u32 %s1, 4
      %s33 = int_to_ptr.hbm [resolvable:$true] %s32
      %s34 = sshll.u32 [#allocation5], 4
      %s35 = int_to_ptr.vmem [resolvable:$true] %s34
      %40 = dma.hbm_to_vmem [thread:$0]  %s33, 2048, %s35, [#allocation6], 128, 128, 8
    $region9: #{tpu_custom_call.1} parent=1 // pred_fallthru
      _
    // Predicated region
    $region10: #{tpu_custom_call.1} parent=1 // pred_check
      _
    $region11: #{tpu_custom_call.1} parent=1 // pred_check_branch
      %42 = sbr.rel (0) target = $region13
    $region12: #{tpu_custom_call.1} parent=1 // pred_region
      _
    $region13: #{tpu_custom_call.1} parent=1 // pred_fallthru
      _
    // Predicated region
    $region14: #{tpu_custom_call.1} parent=1 // pred_check
      _
    $region15: #{tpu_custom_call.1} parent=1 // pred_check_branch
      %44 = sbr.rel (0) target = $region17
    $region16: #{tpu_custom_call.1} parent=1 // pred_region
      %46 = vsyncadd [#allocation6], 0
      %s48 = sshll.u32 %s3, 4
      %s49 = int_to_ptr.hbm [resolvable:$true] %s48
      %s50 = sshll.u32 [#allocation7], 4
      %s51 = int_to_ptr.vmem [resolvable:$true] %s50
      %53 = dma.hbm_to_vmem [thread:$0]  %s49, 128, %s51, [#allocation6]
    $region17: #{tpu_custom_call.1} parent=1 // pred_fallthru
      _
    // Predicated region
    $region18: #{tpu_custom_call.1} parent=1 // pred_check
      _
    $region19: #{tpu_custom_call.1} parent=1 // pred_check_branch
      %55 = sbr.rel (0) target = $region21
    $region20: #{tpu_custom_call.1} parent=1 // pred_region
      %57 = vsyncadd [#allocation9], 0
      %s58 = sshll.u32 %s4, 4
      %s59 = int_to_ptr.hbm [resolvable:$true] %s58
      %s60 = sshll.u32 [#allocation8], 4
      %s61 = int_to_ptr.vmem [resolvable:$true] %s60
      %66 = dma.hbm_to_vmem [thread:$0]  %s59, 2048, %s61, [#allocation9], 128, 128, 8
    $region21: #{tpu_custom_call.1} parent=1 // pred_fallthru
      _
    // Predicated region
    $region22: #{tpu_custom_call.1} parent=1 // pred_check
      _
    $region23: #{tpu_custom_call.1} parent=1 // pred_check_branch
      %68 = sbr.rel (0) target = $region25
    $region24: #{tpu_custom_call.1} parent=1 // pred_region
      _
    $region25: #{tpu_custom_call.1} parent=1 // pred_fallthru
      _
    // Predicated region
    $region26: #{tpu_custom_call.1} parent=1 // pred_check
      _
    $region27: #{tpu_custom_call.1} parent=1 // pred_check_branch
      %70 = sbr.rel (0) target = $region29
    $region28: #{tpu_custom_call.1} parent=1 // pred_region
      %72 = dma.done [#allocation3], 256
    $region29: #{tpu_custom_call.1} parent=1 // pred_fallthru
      _
    // Predicated region
    $region30: #{tpu_custom_call.1} parent=1 // pred_check
      _
    $region31: #{tpu_custom_call.1} parent=1 // pred_check_branch
      %74 = sbr.rel (0) target = $region33
    $region32: #{tpu_custom_call.1} parent=1 // pred_region
      %76 = dma.done [#allocation6], 2048
    $region33: #{tpu_custom_call.1} parent=1 // pred_fallthru
      _
    // Predicated region
    $region34: #{tpu_custom_call.1} parent=1 // pred_check
      _
    $region35: #{tpu_custom_call.1} parent=1 // pred_check_branch
      %78 = sbr.rel (0) target = $region37
    $region36: #{tpu_custom_call.1} parent=1 // pred_region
      %80 = dma.done [#allocation6], 128
    $region37: #{tpu_custom_call.1} parent=1 // pred_fallthru
      _
    // Predicated region
    $region38: #{tpu_custom_call.1} parent=1 // pred_check
      _
    $region39: #{tpu_custom_call.1} parent=1 // pred_check_branch
      %82 = sbr.rel (0) target = $region41
    $region40: #{tpu_custom_call.1} parent=1 // pred_region
      %84 = dma.done [#allocation9], 2048
    $region41: #{tpu_custom_call.1} parent=1 // pred_fallthru
      _
    %v85 = vld [vmem:[#allocation2] sm:$0xff]
    %v86 = vld [vmem:[#allocation2 + $0x8] sm:$0xff]
    %v87 = vld [vmem:[#allocation5 + $0x60] sm:$0xff]
    %v88 = vld [vmem:[#allocation5 + $0x68] sm:$0xff]
    %v89 = vld [vmem:[#allocation5 + $0x70] sm:$0xff]
    %v90 = vld [vmem:[#allocation5 + $0x78] sm:$0xff]
    %vm91 = vcmask 261120
    %v93 = vsel %vm91, %v85, 0
    %v96 = vsel %vm91, %v86, 0
    %98 = vmatpush.msra.mxu0 0.0
    %99 = vmatpush.msra.mxu0 0.0
    %100 = vmatpush.msra.mxu0 0.0
    %101 = vmatpush.msra.mxu0 0.0
    %102 = vmatpush.msra.mxu0 0.0
    %103 = vmatpush.msra.mxu0 0.0
    %104 = vmatpush.msra.mxu0 0.0
    %105 = vmatpush.msra.mxu0 0.0
    %106 = vmatpush.msra.mxu0 0.0
    %107 = vmatpush.msra.mxu0 0.0
    %108 = vmatpush.msra.mxu0 0.0
    %109 = vmatpush.msra.mxu0 0.0
    %110 = vmatpush.msra.mxu0 %v90
    %111 = vmatpush.msra.mxu0 %v89
    %112 = vmatpush.msra.mxu0 %v88
    %113 = vmatpush.msra.mxu0 %v87
    %114 = vmatmul.f32.gmra.mxu0 %v93
    %v115 = vpop.f32.mrf.mxu0
    %v116 = vadd.f32 0.0, %v115
    %117 = vmatmul.f32.gmra.mxu0 %v96
    %v118 = vpop.f32.mrf.mxu0
    %v119 = vadd.f32 0.0, %v118
    %120 = vdwg.mxu0
    %v121 = vld [vmem:[#allocation5 + $0x40] sm:$0xff]
    %v122 = vld [vmem:[#allocation5 + $0x48] sm:$0xff]
    %v123 = vld [vmem:[#allocation5 + $0x50] sm:$0xff]
    %v124 = vld [vmem:[#allocation5 + $0x58] sm:$0xff]
    %v125 = vrot.slane %v116, 1
    %v126 = vrot.slane %v119, 1
    %v127 = vlaneseq
    %v128 = vshrl.u32 %v127, 7
    %vm129 = vcmp.lt.s32.totalorder %v128, 7
    %v130 = vsel %vm129, %v125, %v126
    %v131 = vsel %vm129, %v126, %v125
    %132 = vmatpush.msra.mxu0 0.0
    %133 = vmatpush.msra.mxu0 0.0
    %134 = vmatpush.msra.mxu0 0.0
    %135 = vmatpush.msra.mxu0 0.0
    %136 = vmatpush.msra.mxu0 0.0
    %137 = vmatpush.msra.mxu0 0.0
    %138 = vmatpush.msra.mxu0 0.0
    %139 = vmatpush.msra.mxu0 0.0
    %140 = vmatpush.msra.mxu0 0.0
    %141 = vmatpush.msra.mxu0 0.0
    %142 = vmatpush.msra.mxu0 0.0
    %143 = vmatpush.msra.mxu0 0.0
    %144 = vmatpush.msra.mxu0 %v124
    %145 = vmatpush.msra.mxu0 %v123
    %146 = vmatpush.msra.mxu0 %v122
    %147 = vmatpush.msra.mxu0 %v121
    %148 = vmatmul.f32.gmra.mxu0 %v93
    %v149 = vpop.f32.mrf.mxu0
    %v150 = vadd.f32 %v130, %v149
    %151 = vmatmul.f32.gmra.mxu0 %v96
    %v152 = vpop.f32.mrf.mxu0
    %v153 = vadd.f32 %v131, %v152
    %154 = vdwg.mxu0
    %v155 = vld [vmem:[#allocation5 + $0x20] sm:$0xff]
    %v156 = vld [vmem:[#allocation5 + $0x28] sm:$0xff]
    %v157 = vld [vmem:[#allocation5 + $0x30] sm:$0xff]
    %v158 = vld [vmem:[#allocation5 + $0x38] sm:$0xff]
    %v159 = vrot.slane %v150, 1
    %v160 = vrot.slane %v153, 1
    %v161 = vsel %vm129, %v159, %v160
    %v162 = vsel %vm129, %v160, %v159
    %163 = vmatpush.msra.mxu0 0.0
    %164 = vmatpush.msra.mxu0 0.0
    %165 = vmatpush.msra.mxu0 0.0
    %166 = vmatpush.msra.mxu0 0.0
    %167 = vmatpush.msra.mxu0 0.0
    %168 = vmatpush.msra.mxu0 0.0
    %169 = vmatpush.msra.mxu0 0.0
    %170 = vmatpush.msra.mxu0 0.0
    %171 = vmatpush.msra.mxu0 0.0
    %172 = vmatpush.msra.mxu0 0.0
    %173 = vmatpush.msra.mxu0 0.0
    %174 = vmatpush.msra.mxu0 0.0
    %175 = vmatpush.msra.mxu0 %v158
    %176 = vmatpush.msra.mxu0 %v157
    %177 = vmatpush.msra.mxu0 %v156
    %178 = vmatpush.msra.mxu0 %v155
    %179 = vmatmul.f32.gmra.mxu0 %v93
    %v180 = vpop.f32.mrf.mxu0
    %v181 = vadd.f32 %v161, %v180
    %182 = vmatmul.f32.gmra.mxu0 %v96
    %v183 = vpop.f32.mrf.mxu0
    %v184 = vadd.f32 %v162, %v183
    %185 = vdwg.mxu0
    %v186 = vld [vmem:[#allocation5] sm:$0xff]
    %v187 = vld [vmem:[#allocation5 + $0x8] sm:$0xff]
    %v188 = vld [vmem:[#allocation5 + $0x10] sm:$0xff]
    %v189 = vld [vmem:[#allocation5 + $0x18] sm:$0xff]
    %v190 = vrot.slane %v181, 1
    %v191 = vrot.slane %v184, 1
    %v192 = vsel %vm129, %v190, %v191
    %v193 = vsel %vm129, %v191, %v190
    %194 = vmatpush.msra.mxu0 0.0
    %195 = vmatpush.msra.mxu0 0.0
    %196 = vmatpush.msra.mxu0 0.0
    %197 = vmatpush.msra.mxu0 0.0
    %198 = vmatpush.msra.mxu0 0.0
    %199 = vmatpush.msra.mxu0 0.0
    %200 = vmatpush.msra.mxu0 0.0
    %201 = vmatpush.msra.mxu0 0.0
    %202 = vmatpush.msra.mxu0 0.0
    %203 = vmatpush.msra.mxu0 0.0
    %204 = vmatpush.msra.mxu0 0.0
    %205 = vmatpush.msra.mxu0 0.0
    %206 = vmatpush.msra.mxu0 %v189
    %207 = vmatpush.msra.mxu0 %v188
    %208 = vmatpush.msra.mxu0 %v187
    %209 = vmatpush.msra.mxu0 %v186
    %210 = vmatmul.f32.gmra.mxu0 %v93
    %v211 = vpop.f32.mrf.mxu0
    %v212 = vadd.f32 %v192, %v211
    %213 = vmatmul.f32.gmra.mxu0 %v96
    %v214 = vpop.f32.mrf.mxu0
    %v215 = vadd.f32 %v193, %v214
    %216 = vdwg.mxu0
    %v217 = vld [vmem:[%s2] sm:$0x1]
    %v219 = vperm.slane %v217, 0
    %v221 = vadd.f32 %v212, %v219
    %v222 = vadd.f32 %v215, %v219
    %v223 = vmax.f32 %v221, 0.0
    %v224 = vmax.f32 %v222, 0.0
    %v225 = vld [vmem:[#allocation7] sm:$0xff]
    %v226 = vmul.f32 %v223, %v225
    %v227 = vmul.f32 %v224, %v225
    %v228 = vrot.slane %v226, 4
    %v229 = vmax.f32 %v226, %v228
    %v230 = vrot.slane %v229, 2
    %v231 = vmax.f32 %v229, %v230
    %v232 = vrot.slane %v231, 1
    %v233 = vmax.f32 %v231, %v232
    %v234 = vrot.slane %v227, 4
    %v235 = vmax.f32 %v227, %v234
    %v236 = vrot.slane %v235, 2
    %v237 = vmax.f32 %v235, %v236
    %v238 = vrot.slane %v237, 1
    %v239 = vmax.f32 %v237, %v238
    %v240 = vld [vmem:[#allocation8] sm:$0xff]
    %v241 = vld [vmem:[#allocation8 + $0x8] sm:$0xff]
    %v242 = vld [vmem:[#allocation8 + $0x10] sm:$0xff]
    %v243 = vld [vmem:[#allocation8 + $0x18] sm:$0xff]
    %v244 = vld [vmem:[#allocation8 + $0x20] sm:$0xff]
    %v245 = vld [vmem:[#allocation8 + $0x28] sm:$0xff]
    %v246 = vld [vmem:[#allocation8 + $0x30] sm:$0xff]
    %v247 = vld [vmem:[#allocation8 + $0x38] sm:$0xff]
    %v248 = vld [vmem:[#allocation8 + $0x40] sm:$0xff]
    %v249 = vld [vmem:[#allocation8 + $0x48] sm:$0xff]
    %v250 = vld [vmem:[#allocation8 + $0x50] sm:$0xff]
    %v251 = vld [vmem:[#allocation8 + $0x58] sm:$0xff]
    %v252 = vld [vmem:[#allocation8 + $0x60] sm:$0xff]
    %v253 = vld [vmem:[#allocation8 + $0x68] sm:$0xff]
    %v254 = vld [vmem:[#allocation8 + $0x70] sm:$0xff]
    %v255 = vld [vmem:[#allocation8 + $0x78] sm:$0xff]
    %v256 = vld [vmem:[%s5] sm:$0x1]
    %v258 = vperm.slane %v256, 0
    %vm262 = vcmask 1041409
    %v263 = vsel %vm262, %v239, %v233
    %265 = vmatpush.msra.mxu0 %v255
    %266 = vmatpush.msra.mxu0 %v254
    %267 = vmatpush.msra.mxu0 %v253
    %268 = vmatpush.msra.mxu0 %v252
    %269 = vmatpush.msra.mxu0 %v251
    %270 = vmatpush.msra.mxu0 %v250
    %271 = vmatpush.msra.mxu0 %v249
    %272 = vmatpush.msra.mxu0 %v248
    %273 = vmatpush.msra.mxu0 %v247
    %274 = vmatpush.msra.mxu0 %v246
    %275 = vmatpush.msra.mxu0 %v245
    %276 = vmatpush.msra.mxu0 %v244
    %277 = vmatpush.msra.mxu0 %v243
    %278 = vmatpush.msra.mxu0 %v242
    %279 = vmatpush.msra.mxu0 %v241
    %280 = vmatpush.msra.mxu0 %v240
    %281 = vmatmul.f32.gmra.mxu0 %v263
    %v282 = vpop.f32.mrf.mxu0
    %v283 = vadd.f32 %v258, %v282
    %284 = vdwg.mxu0
    %vm285 = vcmask 1041408
    %v286 = vsel %vm285, %v283, -inf
    %287 = vmax.xlane.f32.xlu0 %v286
    %v288 = vpop.xlane.xlu0 %287
    %v289 = vsub.f32 %v283, %v288
    %v290 = vmul.f32 %v289, 1.442695
    %v291 = vpow.pop %v290
    %v292 = vsel %vm285, %v291, 0.0
    %293 = vadd.xlane.f32.xlu0 %v292
    %v294 = vpop.xlane.xlu0 %293
    %v295 = vrcp.pop %v294
    %v296 = vmul.f32 %v291, %v295
    %297 = vst [vmem:[#allocation10] sm:$0x3] %v296
    // Predicated region
    $region42: #{tpu_custom_call.1} parent=1 // pred_check
      _
    $region43: #{tpu_custom_call.1} parent=1 // pred_check_branch
      %299 = sbr.rel (0) target = $region45
    $region44: #{tpu_custom_call.1} parent=1 // pred_region
      %301 = vsyncadd [#allocation4], 0
      %s303 = sshll.u32 [#allocation10], 4
      %s304 = int_to_ptr.vmem [resolvable:$true] %s303
      %s305 = sshll.u32 %s6, 4
      %s306 = int_to_ptr.hbm [resolvable:$true] %s305
      %308 = dma.vmem_to_hbm [thread:$0]  %s304, 32, %s306, [#allocation4]
    $region45: #{tpu_custom_call.1} parent=1 // pred_fallthru
      _
    // Predicated region
    $region46: #{tpu_custom_call.1} parent=1 // pred_check
      _
    $region47: #{tpu_custom_call.1} parent=1 // pred_check_branch
      %310 = sbr.rel (0) target = $region49
    $region48: #{tpu_custom_call.1} parent=1 // pred_region
      %312 = dma.done [#allocation4], 32
    $region49: #{tpu_custom_call.1} parent=1 // pred_fallthru
      _
    %313 = vsyncpa [#allocation3], 1
    %314 = vsyncpa [#allocation6], 1
    %315 = vsyncpa [#allocation9], 1
    %316 = vsyncpa [#allocation4], 1

// kernel: tpu_custom_call.1
$region0: #{tpu_custom_call.1}
  #allocation0 [shape = 'u32[]', space=smem, size = 0x4, offset = 0x4, fixed_abs, tag = 'smem constant byte address 0x4 - core index']
  #allocation1 [shape = 'u32[72,128]{1,0:T(1,128)}', space=vmem, size = 0x9000, scoped, tag = 'internal scratch']
  %s0 = inlined_call_operand.hbm [shape: f32[16,32], index: 0, kind: input, shape index: {}]
  %s1 = inlined_call_operand.hbm [shape: f32[128,128], index: 1, kind: input, shape index: {}]
  %s2 = inlined_call_operand.vmem [shape: f32[1,128], index: 2, kind: input, shape index: {}]
  %s3 = inlined_call_operand.hbm [shape: f32[8,128], index: 3, kind: input, shape index: {}]
  %s4 = inlined_call_operand.hbm [shape: f32[128,128], index: 4, kind: input, shape index: {}]
  %s5 = inlined_call_operand.vmem [shape: f32[1,128], index: 5, kind: input, shape index: {}]
  %s6 = inlined_call_operand.hbm [shape: f32[2,128], index: 6, kind: output, shape index: {}]
  %s7 = sld [smem:[#allocation0]]
  $region50: #{tpu_custom_call.1} parent=0
    _
  %s9 = ssub.s32 1, %s7
  %s10 = scalar_select 0, %s9, %s7
  $region1: #{tpu_custom_call.1} parent=0
    #allocation2 [shape = 'u8[8192]{0}', space=vmem, size = 0x2000, scoped, tag = 'input window, operand 0, single buffered']
    #allocation3 [shape = 's32[1]{0}', space=sflag, size = 0x4, scoped, tag = 'scoped memory for tpu_custom_call.1']
    #allocation4 [shape = 's32[1]{0}', space=sflag, size = 0x4, scoped, tag = 'scoped memory for tpu_custom_call.1']
    #allocation5 [shape = 'u8[65536]{0}', space=vmem, size = 0x10000, scoped, tag = 'input window, operand 1, single buffered']
    #allocation6 [shape = 's32[1]{0}', space=sflag, size = 0x4, scoped, tag = 'scoped memory for tpu_custom_call.1']
    #allocation7 [shape = 'u8[4096]{0}', space=vmem, size = 0x1000, scoped, tag = 'input window, operand 3, single buffered']
    #allocation8 [shape = 'u8[65536]{0}', space=vmem, size = 0x10000, scoped, tag = 'input window, operand 4, single buffered']
    #allocation9 [shape = 's32[1]{0}', space=sflag, size = 0x4, scoped, tag = 'scoped memory for tpu_custom_call.1']
    #allocation10 [shape = 'u8[1024]{0}', space=vmem, size = 0x400, scoped, tag = 'output window, operand 0, single buffered']
    %11 = vsyncpa [#allocation3], 0
    %12 = vsyncpa [#allocation6], 0
    %13 = vsyncpa [#allocation9], 0
    %14 = vsyncpa [#allocation4], 0
    // Predicated region
    $region2: #{tpu_custom_call.1} parent=1 // pred_check
      _
    $region3: #{tpu_custom_call.1} parent=1 // pred_check_branch
      %16 = sbr.rel (0) target = $region5
    $region4: #{tpu_custom_call.1} parent=1 // pred_region
      %18 = vsyncadd [#allocation3], 0
      %s19 = sshll.u32 %s0, 4
      %s20 = int_to_ptr.hbm [resolvable:$true] %s19
      %s21 = sshll.u32 [#allocation2], 4
      %s22 = int_to_ptr.vmem [resolvable:$true] %s21
      %27 = dma.hbm_to_vmem [thread:$0]  %s20, 256, %s22, [#allocation3], 128, 128, 8
    $region5: #{tpu_custom_call.1} parent=1 // pred_fallthru
      _
    // Predicated region
    $region6: #{tpu_custom_call.1} parent=1 // pred_check
      _
    $region7: #{tpu_custom_call.1} parent=1 // pred_check_branch
      %29 = sbr.rel (0) target = $region9
    $region8: #{tpu_custom_call.1} parent=1 // pred_region
      %31 = vsyncadd [#allocation6], 0
      %s32 = sshll.u32 %s1, 4
      %s33 = int_to_ptr.hbm [resolvable:$true] %s32
      %s34 = sshll.u32 [#allocation5], 4
      %s35 = int_to_ptr.vmem [resolvable:$true] %s34
      %40 = dma.hbm_to_vmem [thread:$0]  %s33, 2048, %s35, [#allocation6], 128, 128, 8
    $region9: #{tpu_custom_call.1} parent=1 // pred_fallthru
      _
    // Predicated region
    $region10: #{tpu_custom_call.1} parent=1 // pred_check
      _
    $region11: #{tpu_custom_call.1} parent=1 // pred_check_branch
      %42 = sbr.rel (0) target = $region13
    $region12: #{tpu_custom_call.1} parent=1 // pred_region
      _
    $region13: #{tpu_custom_call.1} parent=1 // pred_fallthru
      _
    // Predicated region
    $region14: #{tpu_custom_call.1} parent=1 // pred_check
      _
    $region15: #{tpu_custom_call.1} parent=1 // pred_check_branch
      %44 = sbr.rel (0) target = $region17
    $region16: #{tpu_custom_call.1} parent=1 // pred_region
      %46 = vsyncadd [#allocation6], 0
      %s48 = sshll.u32 %s3, 4
      %s49 = int_to_ptr.hbm [resolvable:$true] %s48
      %s50 = sshll.u32 [#allocation7], 4
      %s51 = int_to_ptr.vmem [resolvable:$true] %s50
      %53 = dma.hbm_to_vmem [thread:$0]  %s49, 128, %s51, [#allocation6]
    $region17: #{tpu_custom_call.1} parent=1 // pred_fallthru
      _
    // Predicated region
    $region18: #{tpu_custom_call.1} parent=1 // pred_check
      _
    $region19: #{tpu_custom_call.1} parent=1 // pred_check_branch
      %55 = sbr.rel (0) target = $region21
    $region20: #{tpu_custom_call.1} parent=1 // pred_region
      %57 = vsyncadd [#allocation9], 0
      %s58 = sshll.u32 %s4, 4
      %s59 = int_to_ptr.hbm [resolvable:$true] %s58
      %s60 = sshll.u32 [#allocation8], 4
      %s61 = int_to_ptr.vmem [resolvable:$true] %s60
      %66 = dma.hbm_to_vmem [thread:$0]  %s59, 2048, %s61, [#allocation9], 128, 128, 8
    $region21: #{tpu_custom_call.1} parent=1 // pred_fallthru
      _
    // Predicated region
    $region22: #{tpu_custom_call.1} parent=1 // pred_check
      _
    $region23: #{tpu_custom_call.1} parent=1 // pred_check_branch
      %68 = sbr.rel (0) target = $region25
    $region24: #{tpu_custom_call.1} parent=1 // pred_region
      _
    $region25: #{tpu_custom_call.1} parent=1 // pred_fallthru
      _
    // Predicated region
    $region26: #{tpu_custom_call.1} parent=1 // pred_check
      _
    $region27: #{tpu_custom_call.1} parent=1 // pred_check_branch
      %70 = sbr.rel (0) target = $region29
    $region28: #{tpu_custom_call.1} parent=1 // pred_region
      %72 = dma.done [#allocation3], 256
    $region29: #{tpu_custom_call.1} parent=1 // pred_fallthru
      _
    // Predicated region
    $region30: #{tpu_custom_call.1} parent=1 // pred_check
      _
    $region31: #{tpu_custom_call.1} parent=1 // pred_check_branch
      %74 = sbr.rel (0) target = $region33
    $region32: #{tpu_custom_call.1} parent=1 // pred_region
      %76 = dma.done [#allocation6], 2048
    $region33: #{tpu_custom_call.1} parent=1 // pred_fallthru
      _
    // Predicated region
    $region34: #{tpu_custom_call.1} parent=1 // pred_check
      _
    $region35: #{tpu_custom_call.1} parent=1 // pred_check_branch
      %78 = sbr.rel (0) target = $region37
    $region36: #{tpu_custom_call.1} parent=1 // pred_region
      %80 = dma.done [#allocation6], 128
    $region37: #{tpu_custom_call.1} parent=1 // pred_fallthru
      _
    // Predicated region
    $region38: #{tpu_custom_call.1} parent=1 // pred_check
      _
    $region39: #{tpu_custom_call.1} parent=1 // pred_check_branch
      %82 = sbr.rel (0) target = $region41
    $region40: #{tpu_custom_call.1} parent=1 // pred_region
      %84 = dma.done [#allocation9], 2048
    $region41: #{tpu_custom_call.1} parent=1 // pred_fallthru
      _
    %v85 = vld [vmem:[#allocation2] sm:$0xff]
    %v86 = vld [vmem:[#allocation2 + $0x8] sm:$0xff]
    %v87 = vld [vmem:[#allocation5 + $0x60] sm:$0xff]
    %v88 = vld [vmem:[#allocation5 + $0x68] sm:$0xff]
    %v89 = vld [vmem:[#allocation5 + $0x70] sm:$0xff]
    %v90 = vld [vmem:[#allocation5 + $0x78] sm:$0xff]
    %vm91 = vcmask 261120
    %v93 = vsel %vm91, %v85, 0
    %v96 = vsel %vm91, %v86, 0
    %98 = vmatpush.msra.mxu0 0.0
    %99 = vmatpush.msra.mxu0 0.0
    %100 = vmatpush.msra.mxu0 0.0
    %101 = vmatpush.msra.mxu0 0.0
    %102 = vmatpush.msra.mxu0 0.0
    %103 = vmatpush.msra.mxu0 0.0
    %104 = vmatpush.msra.mxu0 0.0
    %105 = vmatpush.msra.mxu0 0.0
    %106 = vmatpush.msra.mxu0 0.0
    %107 = vmatpush.msra.mxu0 0.0
    %108 = vmatpush.msra.mxu0 0.0
    %109 = vmatpush.msra.mxu0 0.0
    %110 = vmatpush.msra.mxu0 %v90
    %111 = vmatpush.msra.mxu0 %v89
    %112 = vmatpush.msra.mxu0 %v88
    %113 = vmatpush.msra.mxu0 %v87
    %114 = vmatmul.f32.gmra.mxu0 %v93
    %v115 = vpop.f32.mrf.mxu0
    %v116 = vadd.f32 0.0, %v115
    %117 = vmatmul.f32.gmra.mxu0 %v96
    %v118 = vpop.f32.mrf.mxu0
    %v119 = vadd.f32 0.0, %v118
    %120 = vdwg.mxu0
    %v121 = vld [vmem:[#allocation5 + $0x40] sm:$0xff]
    %v122 = vld [vmem:[#allocation5 + $0x48] sm:$0xff]
    %v123 = vld [vmem:[#allocation5 + $0x50] sm:$0xff]
    %v124 = vld [vmem:[#allocation5 + $0x58] sm:$0xff]
    %v125 = vrot.slane %v116, 1
    %v126 = vrot.slane %v119, 1
    %v127 = vlaneseq
    %v128 = vshrl.u32 %v127, 7
    %vm129 = vcmp.lt.s32.totalorder %v128, 7
    %v130 = vsel %vm129, %v125, %v126
    %v131 = vsel %vm129, %v126, %v125
    %132 = vmatpush.msra.mxu0 0.0
    %133 = vmatpush.msra.mxu0 0.0
    %134 = vmatpush.msra.mxu0 0.0
    %135 = vmatpush.msra.mxu0 0.0
    %136 = vmatpush.msra.mxu0 0.0
    %137 = vmatpush.msra.mxu0 0.0
    %138 = vmatpush.msra.mxu0 0.0
    %139 = vmatpush.msra.mxu0 0.0
    %140 = vmatpush.msra.mxu0 0.0
    %141 = vmatpush.msra.mxu0 0.0
    %142 = vmatpush.msra.mxu0 0.0
    %143 = vmatpush.msra.mxu0 0.0
    %144 = vmatpush.msra.mxu0 %v124
    %145 = vmatpush.msra.mxu0 %v123
    %146 = vmatpush.msra.mxu0 %v122
    %147 = vmatpush.msra.mxu0 %v121
    %148 = vmatmul.f32.gmra.mxu0 %v93
    %v149 = vpop.f32.mrf.mxu0
    %v150 = vadd.f32 %v130, %v149
    %151 = vmatmul.f32.gmra.mxu0 %v96
    %v152 = vpop.f32.mrf.mxu0
    %v153 = vadd.f32 %v131, %v152
    %154 = vdwg.mxu0
    %v155 = vld [vmem:[#allocation5 + $0x20] sm:$0xff]
    %v156 = vld [vmem:[#allocation5 + $0x28] sm:$0xff]
    %v157 = vld [vmem:[#allocation5 + $0x30] sm:$0xff]
    %v158 = vld [vmem:[#allocation5 + $0x38] sm:$0xff]
    %v159 = vrot.slane %v150, 1
    %v160 = vrot.slane %v153, 1
    %v161 = vsel %vm129, %v159, %v160
    %v162 = vsel %vm129, %v160, %v159
    %163 = vmatpush.msra.mxu0 0.0
    %164 = vmatpush.msra.mxu0 0.0
    %165 = vmatpush.msra.mxu0 0.0
    %166 = vmatpush.msra.mxu0 0.0
    %167 = vmatpush.msra.mxu0 0.0
    %168 = vmatpush.msra.mxu0 0.0
    %169 = vmatpush.msra.mxu0 0.0
    %170 = vmatpush.msra.mxu0 0.0
    %171 = vmatpush.msra.mxu0 0.0
    %172 = vmatpush.msra.mxu0 0.0
    %173 = vmatpush.msra.mxu0 0.0
    %174 = vmatpush.msra.mxu0 0.0
    %175 = vmatpush.msra.mxu0 %v158
    %176 = vmatpush.msra.mxu0 %v157
    %177 = vmatpush.msra.mxu0 %v156
    %178 = vmatpush.msra.mxu0 %v155
    %179 = vmatmul.f32.gmra.mxu0 %v93
    %v180 = vpop.f32.mrf.mxu0
    %v181 = vadd.f32 %v161, %v180
    %182 = vmatmul.f32.gmra.mxu0 %v96
    %v183 = vpop.f32.mrf.mxu0
    %v184 = vadd.f32 %v162, %v183
    %185 = vdwg.mxu0
    %v186 = vld [vmem:[#allocation5] sm:$0xff]
    %v187 = vld [vmem:[#allocation5 + $0x8] sm:$0xff]
    %v188 = vld [vmem:[#allocation5 + $0x10] sm:$0xff]
    %v189 = vld [vmem:[#allocation5 + $0x18] sm:$0xff]
    %v190 = vrot.slane %v181, 1
    %v191 = vrot.slane %v184, 1
    %v192 = vsel %vm129, %v190, %v191
    %v193 = vsel %vm129, %v191, %v190
    %194 = vmatpush.msra.mxu0 0.0
    %195 = vmatpush.msra.mxu0 0.0
    %196 = vmatpush.msra.mxu0 0.0
    %197 = vmatpush.msra.mxu0 0.0
    %198 = vmatpush.msra.mxu0 0.0
    %199 = vmatpush.msra.mxu0 0.0
    %200 = vmatpush.msra.mxu0 0.0
    %201 = vmatpush.msra.mxu0 0.0
    %202 = vmatpush.msra.mxu0 0.0
    %203 = vmatpush.msra.mxu0 0.0
    %204 = vmatpush.msra.mxu0 0.0
    %205 = vmatpush.msra.mxu0 0.0
    %206 = vmatpush.msra.mxu0 %v189
    %207 = vmatpush.msra.mxu0 %v188
    %208 = vmatpush.msra.mxu0 %v187
    %209 = vmatpush.msra.mxu0 %v186
    %210 = vmatmul.f32.gmra.mxu0 %v93
    %v211 = vpop.f32.mrf.mxu0
    %v212 = vadd.f32 %v192, %v211
    %213 = vmatmul.f32.gmra.mxu0 %v96
    %v214 = vpop.f32.mrf.mxu0
    %v215 = vadd.f32 %v193, %v214
    %216 = vdwg.mxu0
    %v217 = vld [vmem:[%s2] sm:$0x1]
    %v219 = vperm.slane %v217, 0
    %v221 = vadd.f32 %v212, %v219
    %v222 = vadd.f32 %v215, %v219
    %v223 = vmax.f32 %v221, 0.0
    %v224 = vmax.f32 %v222, 0.0
    %v225 = vld [vmem:[#allocation7] sm:$0xff]
    %v226 = vmul.f32 %v223, %v225
    %v227 = vmul.f32 %v224, %v225
    %v228 = vrot.slane %v226, 4
    %v229 = vmax.f32 %v226, %v228
    %v230 = vrot.slane %v229, 2
    %v231 = vmax.f32 %v229, %v230
    %v232 = vrot.slane %v231, 1
    %v233 = vmax.f32 %v231, %v232
    %v234 = vrot.slane %v227, 4
    %v235 = vmax.f32 %v227, %v234
    %v236 = vrot.slane %v235, 2
    %v237 = vmax.f32 %v235, %v236
    %v238 = vrot.slane %v237, 1
    %v239 = vmax.f32 %v237, %v238
    %v240 = vld [vmem:[#allocation8] sm:$0xff]
    %v241 = vld [vmem:[#allocation8 + $0x8] sm:$0xff]
    %v242 = vld [vmem:[#allocation8 + $0x10] sm:$0xff]
    %v243 = vld [vmem:[#allocation8 + $0x18] sm:$0xff]
    %v244 = vld [vmem:[#allocation8 + $0x20] sm:$0xff]
    %v245 = vld [vmem:[#allocation8 + $0x28] sm:$0xff]
    %v246 = vld [vmem:[#allocation8 + $0x30] sm:$0xff]
    %v247 = vld [vmem:[#allocation8 + $0x38] sm:$0xff]
    %v248 = vld [vmem:[#allocation8 + $0x40] sm:$0xff]
    %v249 = vld [vmem:[#allocation8 + $0x48] sm:$0xff]
    %v250 = vld [vmem:[#allocation8 + $0x50] sm:$0xff]
    %v251 = vld [vmem:[#allocation8 + $0x58] sm:$0xff]
    %v252 = vld [vmem:[#allocation8 + $0x60] sm:$0xff]
    %v253 = vld [vmem:[#allocation8 + $0x68] sm:$0xff]
    %v254 = vld [vmem:[#allocation8 + $0x70] sm:$0xff]
    %v255 = vld [vmem:[#allocation8 + $0x78] sm:$0xff]
    %v256 = vld [vmem:[%s5] sm:$0x1]
    %v258 = vperm.slane %v256, 0
    %vm262 = vcmask 1041409
    %v263 = vsel %vm262, %v239, %v233
    %265 = vmatpush.msra.mxu0 %v255
    %266 = vmatpush.msra.mxu0 %v254
    %267 = vmatpush.msra.mxu0 %v253
    %268 = vmatpush.msra.mxu0 %v252
    %269 = vmatpush.msra.mxu0 %v251
    %270 = vmatpush.msra.mxu0 %v250
    %271 = vmatpush.msra.mxu0 %v249
    %272 = vmatpush.msra.mxu0 %v248
    %273 = vmatpush.msra.mxu0 %v247
    %274 = vmatpush.msra.mxu0 %v246
    %275 = vmatpush.msra.mxu0 %v245
    %276 = vmatpush.msra.mxu0 %v244
    %277 = vmatpush.msra.mxu0 %v243
    %278 = vmatpush.msra.mxu0 %v242
    %279 = vmatpush.msra.mxu0 %v241
    %280 = vmatpush.msra.mxu0 %v240
    %281 = vmatmul.f32.gmra.mxu0 %v263
    %v282 = vpop.f32.mrf.mxu0
    %v283 = vadd.f32 %v258, %v282
    %284 = vdwg.mxu0
    %vm285 = vcmask 1041408
    %v286 = vsel %vm285, %v283, -inf
    %287 = vmax.xlane.f32.xlu0 %v286
    %v288 = vpop.xlane.xlu0 %287
    %v289 = vsub.f32 %v283, %v288
    %v290 = vmul.f32 %v289, 1.442695
    %v291 = vpow.pop %v290
    %v292 = vsel %vm285, %v291, 0.0
    %293 = vadd.xlane.f32.xlu0 %v292
    %v294 = vpop.xlane.xlu0 %293
    %v295 = vrcp.pop %v294
    %v296 = vmul.f32 %v291, %v295
    %297 = vst [vmem:[#allocation10] sm:$0x3] %v296
    // Predicated region
    $region42: #{tpu_custom_call.1} parent=1 // pred_check
      _
    $region43: #{tpu_custom_call.1} parent=1 // pred_check_branch
      %299 = sbr.rel (0) target = $region45
    $region44: #{tpu_custom_call.1} parent=1 // pred_region
      %301 = vsyncadd [#allocation4], 0
      %s303 = sshll.u32 [#allocation10], 4
      %s304 = int_to_ptr.vmem [resolvable:$true] %s303
      %s305 = sshll.u32 %s6, 4
      %s306 = int_to_ptr.hbm [resolvable:$true] %s305
      %308 = dma.vmem_to_hbm [thread:$0]  %s304, 32, %s306, [#allocation4]
    $region45: #{tpu_custom_call.1} parent=1 // pred_fallthru
      _
    // Predicated region
    $region46: #{tpu_custom_call.1} parent=1 // pred_check
      _
    $region47: #{tpu_custom_call.1} parent=1 // pred_check_branch
      %310 = sbr.rel (0) target = $region49
    $region48: #{tpu_custom_call.1} parent=1 // pred_region
      %312 = dma.done [#allocation4], 32
    $region49: #{tpu_custom_call.1} parent=1 // pred_fallthru
      _
    %313 = vsyncpa [#allocation3], 1
    %314 = vsyncpa [#allocation6], 1
    %315 = vsyncpa [#allocation9], 1
    %316 = vsyncpa [#allocation4], 1

</llo_original>
